<compile_context>
chip_gen: v6e
topology: v6e:2x2x1
jax: 0.10.0
libtpu: 0.0.40
codegen_flags: <defaults>
</compile_context>

<pallas_src>
import functools

import jax
import jax.numpy as jnp
from jax.experimental import pallas as pl
from jax.experimental.pallas import tpu as pltpu

_NOISE_STDDEV = 0.07
_MIN_BATCH_FOR_KERNEL = 1024


def _noisy_mlp_kernel(x_ref, w1_ref, b1_ref, w2_ref, b2_ref, w3_ref, b3_ref,
                      o_ref, *, training, noise_stddev, seed):
    """Fused forward on one (2, TB) lane-dense batch tile.

    x_ref:  (2, TB) f32 VMEM tile (features on sublanes, batch on lanes)
    w*/b*:  tiny weight/bias tables resident in SMEM, read as scalars
    o_ref:  (1, TB) f32 VMEM tile
    """
    x = x_ref[...]  # (2, TB) f32

    if training:
        # NoisyLinear training path: x + N(0, noise_stddev), same shape as x.
        # Mix the grid step into the seed so every tile draws independent noise.
        pltpu.prng_seed(seed + pl.program_id(0))
        noise = pltpu.stateful_normal(x.shape, jnp.float32) * noise_stddev
        x = x + noise

    x0 = x[0:1, :]  # (1, TB)
    x1 = x[1:2, :]  # (1, TB)

    # l1: NoisyLinear(2, 4) -> ReLU  (unrolled scalar * vector MACs on the VPU)
    h1 = []
    for j in range(4):
        hj = w1_ref[0, j] * x0 + w1_ref[1, j] * x1 + b1_ref[j]
        h1.append(jnp.maximum(hj, 0.0))

    # l2: Linear(4, 4) -> ReLU
    h2 = []
    for j in range(4):
        hj = (w2_ref[0, j] * h1[0] + w2_ref[1, j] * h1[1]
              + w2_ref[2, j] * h1[2] + w2_ref[3, j] * h1[3] + b2_ref[j])
        h2.append(jnp.maximum(hj, 0.0))

    # l3: Linear(4, 1) -> Sigmoid (exp/recip go to the EUP slot, hidden under DMA)
    logits = (w3_ref[0, 0] * h2[0] + w3_ref[1, 0] * h2[1]
              + w3_ref[2, 0] * h2[2] + w3_ref[3, 0] * h2[3] + b3_ref[0])
    o_ref[...] = jax.nn.sigmoid(logits).astype(o_ref.dtype)


def _jax_forward(x, params, *, training=False, seed=0):
    """Plain-JAX path (used for tiny batches and as the reference)."""
    w1, b1, w2, b2, w3, b3 = params
    if training:
        noise = _NOISE_STDDEV * jax.random.normal(
            jax.random.PRNGKey(seed), x.shape, x.dtype)
        x = x + noise
    h1 = jnp.maximum(x @ w1 + b1, 0.0)
    h2 = jnp.maximum(h1 @ w2 + b2, 0.0)
    return jax.nn.sigmoid(h2 @ w3 + b3)


def noisy_module_forward(x, params, *, training=False, seed=0,
                         tile_lanes=8192,
                         min_batch_for_kernel=_MIN_BATCH_FOR_KERNEL):
    """x: (B, 2) f32 -> (B, 1) f32, matching MyNoisyModule.forward."""
    w1, b1, w2, b2, w3, b3 = params
    batch = x.shape[0]

    # Tiny batches: kernel-launch + per-step (~0.35us) overhead dwarfs the work.
    if batch < min_batch_for_kernel:
        return _jax_forward(x, params, training=training, seed=seed)

    # Lane-dense tile size: multiple of 128, capped so small batches don't over-pad.
    tb = min(tile_lanes, ((batch + 511) // 512) * 512)
    tb = max(128, (tb // 128) * 128)
    padded = ((batch + tb - 1) // tb) * tb

    x_t = x.T  # (2, B): batch on the 128-lane axis
    if padded != batch:
        x_t = jnp.pad(x_t, ((0, 0), (0, padded - batch)))

    kernel = functools.partial(
        _noisy_mlp_kernel,
        training=training,
        noise_stddev=_NOISE_STDDEV,
        seed=seed,
    )

    smem_spec = pl.BlockSpec(memory_space=pltpu.MemorySpace.SMEM)

    out = pl.pallas_call(
        kernel,
        out_shape=jax.ShapeDtypeStruct((1, padded), jnp.float32),
        grid=(padded // tb,),
        in_specs=[
            pl.BlockSpec((2, tb), lambda i: (0, i)),  # x tile (double-buffered DMA)
            smem_spec, smem_spec,                     # w1, b1 (resident, scalar reads)
            smem_spec, smem_spec,                     # w2, b2
            smem_spec, smem_spec,                     # w3, b3
        ],
        out_specs=pl.BlockSpec((1, tb), lambda i: (0, i)),
        compiler_params=pltpu.CompilerParams(
            dimension_semantics=("parallel",)),       # megacore sharding on v7x
    )(x_t, w1, b1, w2, b2, w3, b3)

    return out[0, :batch].reshape(batch, 1)


def init_params(key):
    """Deterministic parameter init mirroring the PyTorch module's shapes.

    Weights are stored (in_features, out_features) so forward is x @ W + b; torch
    nn.Linear's (out, in) weight is the transpose of w2/w3 here.
    """
    k1, k2, k3, k4, k5 = jax.random.split(key, 5)

    # NoisyLinear(2, 4): xavier_uniform weight, zero bias.
    bound1 = (6.0 / (2 + 4)) ** 0.5
    w1 = jax.random.uniform(k1, (2, 4), jnp.float32, -bound1, bound1)
    b1 = jnp.zeros((4,), jnp.float32)

    # nn.Linear(4, 4)
    bound2 = 1.0 / (4.0 ** 0.5)
    w2 = jax.random.uniform(k2, (4, 4), jnp.float32, -bound2, bound2)
    b2 = jax.random.uniform(k3, (4,), jnp.float32, -bound2, bound2)

    # nn.Linear(4, 1)
    bound3 = 1.0 / (4.0 ** 0.5)
    w3 = jax.random.uniform(k4, (4, 1), jnp.float32, -bound3, bound3)
    b3 = jax.random.uniform(k5, (1,), jnp.float32, -bound3, bound3)

    return (w1, b1, w2, b2, w3, b3)


def reference_forward(x, params):
    """Pure-JAX reference of the PyTorch forward (training=False)."""
    return _jax_forward(x, params, training=False)


if __name__ == "__main__":
    key = jax.random.PRNGKey(0)
    pkey, xkey, xskey = jax.random.split(key, 3)

    params = init_params(pkey)

    # Main path: batch large enough to dispatch the Pallas kernel; non-multiple of the
    # tile to exercise the pad-and-slice path. tile_lanes=1024 -> grid of 5 pipelined steps.
    batch = 4099
    x = jax.random.normal(xkey, (batch, 2), jnp.float32)

    out = noisy_module_forward(x, params, training=False, tile_lanes=1024)
    out = jax.block_until_ready(out)
    ref = reference_forward(x, params)
    assert out.shape == (batch, 1)
    assert jnp.allclose(out, ref, atol=1e-5, rtol=1e-5), "kernel mismatch vs reference"

    # Small-batch fallback path (B=8 -> pure JAX, no kernel launch).
    x_small = jax.random.normal(xskey, (8, 2), jnp.float32)
    out_small = jax.block_until_ready(noisy_module_forward(x_small, params))
    assert out_small.shape == (8, 1)
    assert jnp.allclose(out_small, reference_forward(x_small, params),
                        atol=1e-5, rtol=1e-5), "fallback mismatch vs reference"

    print("KERNEL_OK")
</pallas_src>

<mosaic_0001>
module attributes {stable_mosaic.version = 11 : i64} {
  func.func @_noisy_mlp_kernel(%arg0: i32, %arg1: memref<2x1024xf32, #tpu.memory_space<vmem>>, %arg2: memref<2x4xf32, #tpu.memory_space<smem>>, %arg3: memref<4xf32, #tpu.memory_space<smem>>, %arg4: memref<4x4xf32, #tpu.memory_space<smem>>, %arg5: memref<4xf32, #tpu.memory_space<smem>>, %arg6: memref<4x1xf32, #tpu.memory_space<smem>>, %arg7: memref<1xf32, #tpu.memory_space<smem>>, %arg8: memref<1x1024xf32, #tpu.memory_space<vmem>>) attributes {dimension_semantics = [#tpu.dimension_semantics<parallel>], iteration_bounds = array<i64: 5>, scalar_prefetch = 0 : i64, scratch_operands = 0 : i64, tpu.core_type = #tpu.core_type<tc>, window_params = [{transform_indices = @transform_0, window_bounds = array<i64: 2, 1024>}, {transform_indices = @transform_1, window_bounds = array<i64: 2, 4>}, {transform_indices = @transform_2, window_bounds = array<i64: 4>}, {transform_indices = @transform_3, window_bounds = array<i64: 4, 4>}, {transform_indices = @transform_4, window_bounds = array<i64: 4>}, {transform_indices = @transform_5, window_bounds = array<i64: 4, 1>}, {transform_indices = @transform_6, window_bounds = array<i64: 1>}, {transform_indices = @transform_7, window_bounds = array<i64: 1, 1024>}]} {
    %c0 = arith.constant 0 : index
    %c0_0 = arith.constant 0 : index
    %0 = vector.load %arg1[%c0, %c0_0] : memref<2x1024xf32, #tpu.memory_space<vmem>>, vector<2x1024xf32>
    %1 = vector.extract_strided_slice %0 {offsets = [0, 0], sizes = [1, 1024], strides = [1, 1]} : vector<2x1024xf32> to vector<1x1024xf32>
    %2 = vector.extract_strided_slice %0 {offsets = [1, 0], sizes = [1, 1024], strides = [1, 1]} : vector<2x1024xf32> to vector<1x1024xf32>
    %c0_1 = arith.constant 0 : index
    %c0_2 = arith.constant 0 : index
    %3 = memref.load %arg2[%c0_1, %c0_2] : memref<2x4xf32, #tpu.memory_space<smem>>
    %4 = vector.broadcast %3 : f32 to vector<1x1024xf32>
    %5 = arith.mulf %4, %1 : vector<1x1024xf32>
    %c1 = arith.constant 1 : index
    %c0_3 = arith.constant 0 : index
    %6 = memref.load %arg2[%c1, %c0_3] : memref<2x4xf32, #tpu.memory_space<smem>>
    %7 = vector.broadcast %6 : f32 to vector<1x1024xf32>
    %8 = arith.mulf %7, %2 : vector<1x1024xf32>
    %9 = arith.addf %5, %8 : vector<1x1024xf32>
    %c0_4 = arith.constant 0 : index
    %10 = memref.load %arg3[%c0_4] : memref<4xf32, #tpu.memory_space<smem>>
    %11 = vector.broadcast %10 : f32 to vector<1x1024xf32>
    %12 = arith.addf %9, %11 : vector<1x1024xf32>
    %cst = arith.constant 0.000000e+00 : f32
    %13 = vector.broadcast %cst : f32 to vector<1x1024xf32>
    %14 = arith.maximumf %12, %13 : vector<1x1024xf32>
    %c0_5 = arith.constant 0 : index
    %c1_6 = arith.constant 1 : index
    %15 = memref.load %arg2[%c0_5, %c1_6] : memref<2x4xf32, #tpu.memory_space<smem>>
    %16 = vector.broadcast %15 : f32 to vector<1x1024xf32>
    %17 = arith.mulf %16, %1 : vector<1x1024xf32>
    %c1_7 = arith.constant 1 : index
    %c1_8 = arith.constant 1 : index
    %18 = memref.load %arg2[%c1_7, %c1_8] : memref<2x4xf32, #tpu.memory_space<smem>>
    %19 = vector.broadcast %18 : f32 to vector<1x1024xf32>
    %20 = arith.mulf %19, %2 : vector<1x1024xf32>
    %21 = arith.addf %17, %20 : vector<1x1024xf32>
    %c1_9 = arith.constant 1 : index
    %22 = memref.load %arg3[%c1_9] : memref<4xf32, #tpu.memory_space<smem>>
    %23 = vector.broadcast %22 : f32 to vector<1x1024xf32>
    %24 = arith.addf %21, %23 : vector<1x1024xf32>
    %cst_10 = arith.constant 0.000000e+00 : f32
    %25 = vector.broadcast %cst_10 : f32 to vector<1x1024xf32>
    %26 = arith.maximumf %24, %25 : vector<1x1024xf32>
    %c0_11 = arith.constant 0 : index
    %c2 = arith.constant 2 : index
    %27 = memref.load %arg2[%c0_11, %c2] : memref<2x4xf32, #tpu.memory_space<smem>>
    %28 = vector.broadcast %27 : f32 to vector<1x1024xf32>
    %29 = arith.mulf %28, %1 : vector<1x1024xf32>
    %c1_12 = arith.constant 1 : index
    %c2_13 = arith.constant 2 : index
    %30 = memref.load %arg2[%c1_12, %c2_13] : memref<2x4xf32, #tpu.memory_space<smem>>
    %31 = vector.broadcast %30 : f32 to vector<1x1024xf32>
    %32 = arith.mulf %31, %2 : vector<1x1024xf32>
    %33 = arith.addf %29, %32 : vector<1x1024xf32>
    %c2_14 = arith.constant 2 : index
    %34 = memref.load %arg3[%c2_14] : memref<4xf32, #tpu.memory_space<smem>>
    %35 = vector.broadcast %34 : f32 to vector<1x1024xf32>
    %36 = arith.addf %33, %35 : vector<1x1024xf32>
    %cst_15 = arith.constant 0.000000e+00 : f32
    %37 = vector.broadcast %cst_15 : f32 to vector<1x1024xf32>
    %38 = arith.maximumf %36, %37 : vector<1x1024xf32>
    %c0_16 = arith.constant 0 : index
    %c3 = arith.constant 3 : index
    %39 = memref.load %arg2[%c0_16, %c3] : memref<2x4xf32, #tpu.memory_space<smem>>
    %40 = vector.broadcast %39 : f32 to vector<1x1024xf32>
    %41 = arith.mulf %40, %1 : vector<1x1024xf32>
    %c1_17 = arith.constant 1 : index
    %c3_18 = arith.constant 3 : index
    %42 = memref.load %arg2[%c1_17, %c3_18] : memref<2x4xf32, #tpu.memory_space<smem>>
    %43 = vector.broadcast %42 : f32 to vector<1x1024xf32>
    %44 = arith.mulf %43, %2 : vector<1x1024xf32>
    %45 = arith.addf %41, %44 : vector<1x1024xf32>
    %c3_19 = arith.constant 3 : index
    %46 = memref.load %arg3[%c3_19] : memref<4xf32, #tpu.memory_space<smem>>
    %47 = vector.broadcast %46 : f32 to vector<1x1024xf32>
    %48 = arith.addf %45, %47 : vector<1x1024xf32>
    %cst_20 = arith.constant 0.000000e+00 : f32
    %49 = vector.broadcast %cst_20 : f32 to vector<1x1024xf32>
    %50 = arith.maximumf %48, %49 : vector<1x1024xf32>
    %c0_21 = arith.constant 0 : index
    %c0_22 = arith.constant 0 : index
    %51 = memref.load %arg4[%c0_21, %c0_22] : memref<4x4xf32, #tpu.memory_space<smem>>
    %52 = vector.broadcast %51 : f32 to vector<1x1024xf32>
    %53 = arith.mulf %52, %14 : vector<1x1024xf32>
    %c1_23 = arith.constant 1 : index
    %c0_24 = arith.constant 0 : index
    %54 = memref.load %arg4[%c1_23, %c0_24] : memref<4x4xf32, #tpu.memory_space<smem>>
    %55 = vector.broadcast %54 : f32 to vector<1x1024xf32>
    %56 = arith.mulf %55, %26 : vector<1x1024xf32>
    %57 = arith.addf %53, %56 : vector<1x1024xf32>
    %c2_25 = arith.constant 2 : index
    %c0_26 = arith.constant 0 : index
    %58 = memref.load %arg4[%c2_25, %c0_26] : memref<4x4xf32, #tpu.memory_space<smem>>
    %59 = vector.broadcast %58 : f32 to vector<1x1024xf32>
    %60 = arith.mulf %59, %38 : vector<1x1024xf32>
    %61 = arith.addf %57, %60 : vector<1x1024xf32>
    %c3_27 = arith.constant 3 : index
    %c0_28 = arith.constant 0 : index
    %62 = memref.load %arg4[%c3_27, %c0_28] : memref<4x4xf32, #tpu.memory_space<smem>>
    %63 = vector.broadcast %62 : f32 to vector<1x1024xf32>
    %64 = arith.mulf %63, %50 : vector<1x1024xf32>
    %65 = arith.addf %61, %64 : vector<1x1024xf32>
    %c0_29 = arith.constant 0 : index
    %66 = memref.load %arg5[%c0_29] : memref<4xf32, #tpu.memory_space<smem>>
    %67 = vector.broadcast %66 : f32 to vector<1x1024xf32>
    %68 = arith.addf %65, %67 : vector<1x1024xf32>
    %cst_30 = arith.constant 0.000000e+00 : f32
    %69 = vector.broadcast %cst_30 : f32 to vector<1x1024xf32>
    %70 = arith.maximumf %68, %69 : vector<1x1024xf32>
    %c0_31 = arith.constant 0 : index
    %c1_32 = arith.constant 1 : index
    %71 = memref.load %arg4[%c0_31, %c1_32] : memref<4x4xf32, #tpu.memory_space<smem>>
    %72 = vector.broadcast %71 : f32 to vector<1x1024xf32>
    %73 = arith.mulf %72, %14 : vector<1x1024xf32>
    %c1_33 = arith.constant 1 : index
    %c1_34 = arith.constant 1 : index
    %74 = memref.load %arg4[%c1_33, %c1_34] : memref<4x4xf32, #tpu.memory_space<smem>>
    %75 = vector.broadcast %74 : f32 to vector<1x1024xf32>
    %76 = arith.mulf %75, %26 : vector<1x1024xf32>
    %77 = arith.addf %73, %76 : vector<1x1024xf32>
    %c2_35 = arith.constant 2 : index
    %c1_36 = arith.constant 1 : index
    %78 = memref.load %arg4[%c2_35, %c1_36] : memref<4x4xf32, #tpu.memory_space<smem>>
    %79 = vector.broadcast %78 : f32 to vector<1x1024xf32>
    %80 = arith.mulf %79, %38 : vector<1x1024xf32>
    %81 = arith.addf %77, %80 : vector<1x1024xf32>
    %c3_37 = arith.constant 3 : index
    %c1_38 = arith.constant 1 : index
    %82 = memref.load %arg4[%c3_37, %c1_38] : memref<4x4xf32, #tpu.memory_space<smem>>
    %83 = vector.broadcast %82 : f32 to vector<1x1024xf32>
    %84 = arith.mulf %83, %50 : vector<1x1024xf32>
    %85 = arith.addf %81, %84 : vector<1x1024xf32>
    %c1_39 = arith.constant 1 : index
    %86 = memref.load %arg5[%c1_39] : memref<4xf32, #tpu.memory_space<smem>>
    %87 = vector.broadcast %86 : f32 to vector<1x1024xf32>
    %88 = arith.addf %85, %87 : vector<1x1024xf32>
    %cst_40 = arith.constant 0.000000e+00 : f32
    %89 = vector.broadcast %cst_40 : f32 to vector<1x1024xf32>
    %90 = arith.maximumf %88, %89 : vector<1x1024xf32>
    %c0_41 = arith.constant 0 : index
    %c2_42 = arith.constant 2 : index
    %91 = memref.load %arg4[%c0_41, %c2_42] : memref<4x4xf32, #tpu.memory_space<smem>>
    %92 = vector.broadcast %91 : f32 to vector<1x1024xf32>
    %93 = arith.mulf %92, %14 : vector<1x1024xf32>
    %c1_43 = arith.constant 1 : index
    %c2_44 = arith.constant 2 : index
    %94 = memref.load %arg4[%c1_43, %c2_44] : memref<4x4xf32, #tpu.memory_space<smem>>
    %95 = vector.broadcast %94 : f32 to vector<1x1024xf32>
    %96 = arith.mulf %95, %26 : vector<1x1024xf32>
    %97 = arith.addf %93, %96 : vector<1x1024xf32>
    %c2_45 = arith.constant 2 : index
    %c2_46 = arith.constant 2 : index
    %98 = memref.load %arg4[%c2_45, %c2_46] : memref<4x4xf32, #tpu.memory_space<smem>>
    %99 = vector.broadcast %98 : f32 to vector<1x1024xf32>
    %100 = arith.mulf %99, %38 : vector<1x1024xf32>
    %101 = arith.addf %97, %100 : vector<1x1024xf32>
    %c3_47 = arith.constant 3 : index
    %c2_48 = arith.constant 2 : index
    %102 = memref.load %arg4[%c3_47, %c2_48] : memref<4x4xf32, #tpu.memory_space<smem>>
    %103 = vector.broadcast %102 : f32 to vector<1x1024xf32>
    %104 = arith.mulf %103, %50 : vector<1x1024xf32>
    %105 = arith.addf %101, %104 : vector<1x1024xf32>
    %c2_49 = arith.constant 2 : index
    %106 = memref.load %arg5[%c2_49] : memref<4xf32, #tpu.memory_space<smem>>
    %107 = vector.broadcast %106 : f32 to vector<1x1024xf32>
    %108 = arith.addf %105, %107 : vector<1x1024xf32>
    %cst_50 = arith.constant 0.000000e+00 : f32
    %109 = vector.broadcast %cst_50 : f32 to vector<1x1024xf32>
    %110 = arith.maximumf %108, %109 : vector<1x1024xf32>
    %c0_51 = arith.constant 0 : index
    %c3_52 = arith.constant 3 : index
    %111 = memref.load %arg4[%c0_51, %c3_52] : memref<4x4xf32, #tpu.memory_space<smem>>
    %112 = vector.broadcast %111 : f32 to vector<1x1024xf32>
    %113 = arith.mulf %112, %14 : vector<1x1024xf32>
    %c1_53 = arith.constant 1 : index
    %c3_54 = arith.constant 3 : index
    %114 = memref.load %arg4[%c1_53, %c3_54] : memref<4x4xf32, #tpu.memory_space<smem>>
    %115 = vector.broadcast %114 : f32 to vector<1x1024xf32>
    %116 = arith.mulf %115, %26 : vector<1x1024xf32>
    %117 = arith.addf %113, %116 : vector<1x1024xf32>
    %c2_55 = arith.constant 2 : index
    %c3_56 = arith.constant 3 : index
    %118 = memref.load %arg4[%c2_55, %c3_56] : memref<4x4xf32, #tpu.memory_space<smem>>
    %119 = vector.broadcast %118 : f32 to vector<1x1024xf32>
    %120 = arith.mulf %119, %38 : vector<1x1024xf32>
    %121 = arith.addf %117, %120 : vector<1x1024xf32>
    %c3_57 = arith.constant 3 : index
    %c3_58 = arith.constant 3 : index
    %122 = memref.load %arg4[%c3_57, %c3_58] : memref<4x4xf32, #tpu.memory_space<smem>>
    %123 = vector.broadcast %122 : f32 to vector<1x1024xf32>
    %124 = arith.mulf %123, %50 : vector<1x1024xf32>
    %125 = arith.addf %121, %124 : vector<1x1024xf32>
    %c3_59 = arith.constant 3 : index
    %126 = memref.load %arg5[%c3_59] : memref<4xf32, #tpu.memory_space<smem>>
    %127 = vector.broadcast %126 : f32 to vector<1x1024xf32>
    %128 = arith.addf %125, %127 : vector<1x1024xf32>
    %cst_60 = arith.constant 0.000000e+00 : f32
    %129 = vector.broadcast %cst_60 : f32 to vector<1x1024xf32>
    %130 = arith.maximumf %128, %129 : vector<1x1024xf32>
    %c0_61 = arith.constant 0 : index
    %c0_62 = arith.constant 0 : index
    %131 = memref.load %arg6[%c0_61, %c0_62] : memref<4x1xf32, #tpu.memory_space<smem>>
    %132 = vector.broadcast %131 : f32 to vector<1x1024xf32>
    %133 = arith.mulf %132, %70 : vector<1x1024xf32>
    %c1_63 = arith.constant 1 : index
    %c0_64 = arith.constant 0 : index
    %134 = memref.load %arg6[%c1_63, %c0_64] : memref<4x1xf32, #tpu.memory_space<smem>>
    %135 = vector.broadcast %134 : f32 to vector<1x1024xf32>
    %136 = arith.mulf %135, %90 : vector<1x1024xf32>
    %137 = arith.addf %133, %136 : vector<1x1024xf32>
    %c2_65 = arith.constant 2 : index
    %c0_66 = arith.constant 0 : index
    %138 = memref.load %arg6[%c2_65, %c0_66] : memref<4x1xf32, #tpu.memory_space<smem>>
    %139 = vector.broadcast %138 : f32 to vector<1x1024xf32>
    %140 = arith.mulf %139, %110 : vector<1x1024xf32>
    %141 = arith.addf %137, %140 : vector<1x1024xf32>
    %c3_67 = arith.constant 3 : index
    %c0_68 = arith.constant 0 : index
    %142 = memref.load %arg6[%c3_67, %c0_68] : memref<4x1xf32, #tpu.memory_space<smem>>
    %143 = vector.broadcast %142 : f32 to vector<1x1024xf32>
    %144 = arith.mulf %143, %130 : vector<1x1024xf32>
    %145 = arith.addf %141, %144 : vector<1x1024xf32>
    %c0_69 = arith.constant 0 : index
    %146 = memref.load %arg7[%c0_69] : memref<1xf32, #tpu.memory_space<smem>>
    %147 = vector.broadcast %146 : f32 to vector<1x1024xf32>
    %148 = arith.addf %145, %147 : vector<1x1024xf32>
    %149 = arith.negf %148 : vector<1x1024xf32>
    %150 = math.exp %149 : vector<1x1024xf32>
    %cst_70 = arith.constant 1.000000e+00 : f32
    %151 = vector.broadcast %cst_70 : f32 to vector<1x1024xf32>
    %152 = arith.addf %151, %150 : vector<1x1024xf32>
    %153 = arith.divf %151, %152 : vector<1x1024xf32>
    %c0_71 = arith.constant 0 : index
    %c0_72 = arith.constant 0 : index
    %154 = vector.load %arg8[%c0_71, %c0_72] : memref<1x1024xf32, #tpu.memory_space<vmem>>, vector<1x1024xf32>
    tpu.vector_store %arg8[%c0_71, %c0_72], %153 {strides = array<i32>} : memref<1x1024xf32, #tpu.memory_space<vmem>>, vector<1x1024xf32>,
    return
  }
  func.func @transform_0(%arg0: i32) -> (i32, i32) {
    %c0_i32 = arith.constant 0 : i32
    %c0_i32_0 = arith.constant 0 : i32
    return %c0_i32, %arg0 : i32, i32
  }
  func.func @transform_1(%arg0: i32) -> (i32, i32) {
    %c0_i32 = arith.constant 0 : i32
    %c0_i32_0 = arith.constant 0 : i32
    %c0_i32_1 = arith.constant 0 : i32
    return %c0_i32, %c0_i32_0 : i32, i32
  }
  func.func @transform_2(%arg0: i32) -> i32 {
    %c0_i32 = arith.constant 0 : i32
    %c0_i32_0 = arith.constant 0 : i32
    return %c0_i32 : i32
  }
  func.func @transform_3(%arg0: i32) -> (i32, i32) {
    %c0_i32 = arith.constant 0 : i32
    %c0_i32_0 = arith.constant 0 : i32
    %c0_i32_1 = arith.constant 0 : i32
    return %c0_i32, %c0_i32_0 : i32, i32
  }
  func.func @transform_4(%arg0: i32) -> i32 {
    %c0_i32 = arith.constant 0 : i32
    %c0_i32_0 = arith.constant 0 : i32
    return %c0_i32 : i32
  }
  func.func @transform_5(%arg0: i32) -> (i32, i32) {
    %c0_i32 = arith.constant 0 : i32
    %c0_i32_0 = arith.constant 0 : i32
    %c0_i32_1 = arith.constant 0 : i32
    return %c0_i32, %c0_i32_0 : i32, i32
  }
  func.func @transform_6(%arg0: i32) -> i32 {
    %c0_i32 = arith.constant 0 : i32
    %c0_i32_0 = arith.constant 0 : i32
    return %c0_i32 : i32
  }
  func.func @transform_7(%arg0: i32) -> (i32, i32) {
    %c0_i32 = arith.constant 0 : i32
    %c0_i32_0 = arith.constant 0 : i32
    return %c0_i32, %arg0 : i32, i32
  }
}

</mosaic_0001>

<llo_original>
// kernel: tpu_custom_call.1
$region0: #{tpu_custom_call.1}
  #allocation0 [shape = 'u32[]', space=smem, size = 0x4, offset = 0x4, fixed_abs, tag = 'smem constant byte address 0x4 - core index']
  #allocation1 [shape = 'u32[144,128]{1,0:T(1,128)}', space=vmem, size = 0x12000, scoped, tag = 'internal scratch']
  #allocation2 [shape = 'f32[1]{0:T(128)S(6)}', space=smem, size = 0x200, scoped, tag = 'scoped memory for tpu_custom_call.1']
  %s0 = inlined_call_operand.hbm [shape: f32[2,5120], index: 0, kind: input, shape index: {}]
  %s1 = inlined_call_operand.vmem [shape: f32[2,4], index: 1, kind: input, shape index: {}]
  %s2 = inlined_call_operand.vmem [shape: f32[4], index: 2, kind: input, shape index: {}]
  %s3 = inlined_call_operand.vmem [shape: f32[4,4], index: 3, kind: input, shape index: {}]
  %s4 = inlined_call_operand.vmem [shape: f32[4], index: 4, kind: input, shape index: {}]
  %s5 = inlined_call_operand.vmem [shape: f32[4,1], index: 5, kind: input, shape index: {}]
  %s6 = inlined_call_operand.<no memory space> [shape: f32[1], index: 6, kind: input, shape index: {}]
  %s7 = inlined_call_operand.hbm [shape: f32[1,5120], index: 7, kind: output, shape index: {}]
  %s8 = sld [smem:[#allocation0]]
  $region85: #{tpu_custom_call.1} parent=0
    _
  %s10 = ssub.s32 1, %s8
  %s11 = scalar_select 0, %s10, %s8
  %12 = sst [smem:[#allocation2]] %s6
  $region1: #{tpu_custom_call.1} parent=0
    #allocation3 [shape = 'u8[16384]{0}', space=vmem, size = 0x4000, scoped, tag = 'input window, operand 0']
    #allocation4 [shape = 's32[2]{0}', space=sflag, size = 0x8, scoped, tag = 'scoped memory for tpu_custom_call.1']
    #allocation5 [shape = 's32[2]{0}', space=sflag, size = 0x8, scoped, tag = 'scoped memory for tpu_custom_call.1']
    #allocation6 [shape = 's32[2]{0}', space=sflag, size = 0x8, scoped, tag = 'scoped memory for tpu_custom_call.1']
    #allocation7 [shape = 'u8[1024]{0}', space=smem, size = 0x400, scoped, tag = 'input window, operand 1, single buffered']
    #allocation8 [shape = 'u8[512]{0}', space=smem, size = 0x200, scoped, tag = 'input window, operand 2, single buffered']
    #allocation9 [shape = 's32[1]{0}', space=sflag, size = 0x4, scoped, tag = 'scoped memory for tpu_custom_call.1']
    #allocation10 [shape = 'u8[2048]{0}', space=smem, size = 0x800, scoped, tag = 'input window, operand 3, single buffered']
    #allocation11 [shape = 'u8[512]{0}', space=smem, size = 0x200, scoped, tag = 'input window, operand 4, single buffered']
    #allocation12 [shape = 's32[1]{0}', space=sflag, size = 0x4, scoped, tag = 'scoped memory for tpu_custom_call.1']
    #allocation13 [shape = 'u8[2048]{0}', space=smem, size = 0x800, scoped, tag = 'input window, operand 5, single buffered']
    #allocation14 [shape = 'u8[8192]{0}', space=vmem, size = 0x2000, scoped, tag = 'output window, operand 0']
    %13 = vsyncpa [#allocation4], 0
    %s14 = scalar_lea.sflag [#allocation4], 1
    %15 = vsyncpa %s14, 0
    %16 = vsyncpa [#allocation6], 0
    %17 = vsyncpa [#allocation9], 0
    %18 = vsyncpa [#allocation12], 0
    %19 = vsyncpa [#allocation5], 0
    %s20 = scalar_lea.sflag [#allocation5], 1
    %21 = vsyncpa %s20, 0
    loop: start=0, step=1, limit=7
    $region2: #{tpu_custom_call.1} parent=1 // loop_pre_header
      _
    $region3: #{tpu_custom_call.1} parent=1 // loop_header
      %s23 = sphi 0, %s27
      %p24 = scmp.ge.s32.totalorder %s23, 7
      %s33 = sphi 0, %s35
      %s36 = sphi 0, %s33
      %s37 = sphi 0, %s36
      %s53 = sphi 0, %s37
      %s57 = sphi 0, %s57
      %s59 = sphi 0, %s57
      %s60 = sphi 0, %s59
      %s74 = sphi 0, %s60
      %s78 = sphi 0, %s78
      %s80 = sphi 0, %s78
      %s81 = sphi 0, %s80
      %s95 = sphi 0, %s81
      %s99 = sphi 0, %s99
      %s101 = sphi 0, %s99
      %s102 = sphi 0, %s101
      %s116 = sphi 0, %s102
      %s120 = sphi 0, %s120
      %s122 = sphi 0, %s120
      %s123 = sphi 0, %s122
      %s137 = sphi 0, %s123
      %s141 = sphi 0, %s141
      %s143 = sphi 0, %s141
      %s144 = sphi 0, %s143
      %s158 = sphi 0, %s144
      %s162 = sphi 0, %s162
      %s164 = sphi 0, %s162
      %s165 = sphi 0, %s164
      %s179 = sphi 0, %s165
      %s185 = sphi 0, %s187
      %s188 = sphi 0, %s185
      %s189 = sphi 0, %s188
      %s205 = sphi 0, %s189
    $region4: #{tpu_custom_call.1} parent=1 // loop_header_branch
      %26 = sbr.rel (%p24) target = $region8
    $region5: #{tpu_custom_call.1} parent=1 // loop_body
      %s28 = ssub.s32 %s23, 1
      %s29 = ssub.s32 %s23, 2
      %s30 = sadd.s32 %s23, 1
      %s31 = ssub.s32 %s23, %s30
      %p32 = scmp.eq.s32.totalorder %s31, 0
      %s34 = sadd.s32 %s33, 1
      %s35 = scalar_select %p32, %s33, %s34
      %p38 = pneg %p32
      %p39 = scmp.eq.s32.totalorder %s23, 4
      %p40 = por %p38, %p39
      %p41 = scmp.ne.s32.totalorder %s33, %s36
      %p42 = scmp.eq.s32.totalorder %s23, 0
      %p43 = por %p41, %p42
      %p44 = scmp.ne.s32.totalorder %s33, %s36
      %p45 = scmp.eq.s32.totalorder %s28, 4
      %p46 = por %p44, %p45
      %p47 = scmp.ne.s32.totalorder %s36, %s37
      %p48 = scmp.eq.s32.totalorder %s28, 0
      %p49 = por %p47, %p48
      %p50 = scmp.ne.s32.totalorder %s36, %s37
      %p51 = scmp.eq.s32.totalorder %s29, 4
      %p52 = por %p50, %p51
      %p54 = scmp.ne.s32.totalorder %s37, %s53
      %p55 = scmp.eq.s32.totalorder %s29, 0
      %p56 = por %p54, %p55
      %s58 = sadd.s32 %s57, 1
      %p61 = scmp.eq.s32.totalorder %s23, 4
      %p62 = scmp.ne.s32.totalorder %s57, %s59
      %p63 = scmp.eq.s32.totalorder %s23, 0
      %p64 = por %p62, %p63
      %p65 = scmp.ne.s32.totalorder %s57, %s59
      %p66 = scmp.eq.s32.totalorder %s28, 4
      %p67 = por %p65, %p66
      %p68 = scmp.ne.s32.totalorder %s59, %s60
      %p69 = scmp.eq.s32.totalorder %s28, 0
      %p70 = por %p68, %p69
      %p71 = scmp.ne.s32.totalorder %s59, %s60
      %p72 = scmp.eq.s32.totalorder %s29, 4
      %p73 = por %p71, %p72
      %p75 = scmp.ne.s32.totalorder %s60, %s74
      %p76 = scmp.eq.s32.totalorder %s29, 0
      %p77 = por %p75, %p76
      %s79 = sadd.s32 %s78, 1
      %p82 = scmp.eq.s32.totalorder %s23, 4
      %p83 = scmp.ne.s32.totalorder %s78, %s80
      %p84 = scmp.eq.s32.totalorder %s23, 0
      %p85 = por %p83, %p84
      %p86 = scmp.ne.s32.totalorder %s78, %s80
      %p87 = scmp.eq.s32.totalorder %s28, 4
      %p88 = por %p86, %p87
      %p89 = scmp.ne.s32.totalorder %s80, %s81
      %p90 = scmp.eq.s32.totalorder %s28, 0
      %p91 = por %p89, %p90
      %p92 = scmp.ne.s32.totalorder %s80, %s81
      %p93 = scmp.eq.s32.totalorder %s29, 4
      %p94 = por %p92, %p93
      %p96 = scmp.ne.s32.totalorder %s81, %s95
      %p97 = scmp.eq.s32.totalorder %s29, 0
      %p98 = por %p96, %p97
      %s100 = sadd.s32 %s99, 1
      %p103 = scmp.eq.s32.totalorder %s23, 4
      %p104 = scmp.ne.s32.totalorder %s99, %s101
      %p105 = scmp.eq.s32.totalorder %s23, 0
      %p106 = por %p104, %p105
      %p107 = scmp.ne.s32.totalorder %s99, %s101
      %p108 = scmp.eq.s32.totalorder %s28, 4
      %p109 = por %p107, %p108
      %p110 = scmp.ne.s32.totalorder %s101, %s102
      %p111 = scmp.eq.s32.totalorder %s28, 0
      %p112 = por %p110, %p111
      %p113 = scmp.ne.s32.totalorder %s101, %s102
      %p114 = scmp.eq.s32.totalorder %s29, 4
      %p115 = por %p113, %p114
      %p117 = scmp.ne.s32.totalorder %s102, %s116
      %p118 = scmp.eq.s32.totalorder %s29, 0
      %p119 = por %p117, %p118
      %s121 = sadd.s32 %s120, 1
      %p124 = scmp.eq.s32.totalorder %s23, 4
      %p125 = scmp.ne.s32.totalorder %s120, %s122
      %p126 = scmp.eq.s32.totalorder %s23, 0
      %p127 = por %p125, %p126
      %p128 = scmp.ne.s32.totalorder %s120, %s122
      %p129 = scmp.eq.s32.totalorder %s28, 4
      %p130 = por %p128, %p129
      %p131 = scmp.ne.s32.totalorder %s122, %s123
      %p132 = scmp.eq.s32.totalorder %s28, 0
      %p133 = por %p131, %p132
      %p134 = scmp.ne.s32.totalorder %s122, %s123
      %p135 = scmp.eq.s32.totalorder %s29, 4
      %p136 = por %p134, %p135
      %p138 = scmp.ne.s32.totalorder %s123, %s137
      %p139 = scmp.eq.s32.totalorder %s29, 0
      %p140 = por %p138, %p139
      %s142 = sadd.s32 %s141, 1
      %p145 = scmp.eq.s32.totalorder %s23, 4
      %p146 = scmp.ne.s32.totalorder %s141, %s143
      %p147 = scmp.eq.s32.totalorder %s23, 0
      %p148 = por %p146, %p147
      %p149 = scmp.ne.s32.totalorder %s141, %s143
      %p150 = scmp.eq.s32.totalorder %s28, 4
      %p151 = por %p149, %p150
      %p152 = scmp.ne.s32.totalorder %s143, %s144
      %p153 = scmp.eq.s32.totalorder %s28, 0
      %p154 = por %p152, %p153
      %p155 = scmp.ne.s32.totalorder %s143, %s144
      %p156 = scmp.eq.s32.totalorder %s29, 4
      %p157 = por %p155, %p156
      %p159 = scmp.ne.s32.totalorder %s144, %s158
      %p160 = scmp.eq.s32.totalorder %s29, 0
      %p161 = por %p159, %p160
      %s163 = sadd.s32 %s162, 1
      %p166 = scmp.eq.s32.totalorder %s23, 4
      %p167 = scmp.ne.s32.totalorder %s162, %s164
      %p168 = scmp.eq.s32.totalorder %s23, 0
      %p169 = por %p167, %p168
      %p170 = scmp.ne.s32.totalorder %s162, %s164
      %p171 = scmp.eq.s32.totalorder %s28, 4
      %p172 = por %p170, %p171
      %p173 = scmp.ne.s32.totalorder %s164, %s165
      %p174 = scmp.eq.s32.totalorder %s28, 0
      %p175 = por %p173, %p174
      %p176 = scmp.ne.s32.totalorder %s164, %s165
      %p177 = scmp.eq.s32.totalorder %s29, 4
      %p178 = por %p176, %p177
      %p180 = scmp.ne.s32.totalorder %s165, %s179
      %p181 = scmp.eq.s32.totalorder %s29, 0
      %p182 = por %p180, %p181
      %s183 = ssub.s32 %s23, %s30
      %p184 = scmp.eq.s32.totalorder %s183, 0
      %s186 = sadd.s32 %s185, 1
      %s187 = scalar_select %p184, %s185, %s186
      %p190 = pneg %p184
      %p191 = scmp.eq.s32.totalorder %s23, 4
      %p192 = por %p190, %p191
      %p193 = scmp.ne.s32.totalorder %s185, %s188
      %p194 = scmp.eq.s32.totalorder %s23, 0
      %p195 = por %p193, %p194
      %p196 = scmp.ne.s32.totalorder %s185, %s188
      %p197 = scmp.eq.s32.totalorder %s28, 4
      %p198 = por %p196, %p197
      %p199 = scmp.ne.s32.totalorder %s188, %s189
      %p200 = scmp.eq.s32.totalorder %s28, 0
      %p201 = por %p199, %p200
      %p202 = scmp.ne.s32.totalorder %s188, %s189
      %p203 = scmp.eq.s32.totalorder %s29, 4
      %p204 = por %p202, %p203
      %p206 = scmp.ne.s32.totalorder %s189, %s205
      %p207 = scmp.eq.s32.totalorder %s29, 0
      %p208 = por %p206, %p207
      %p209 = scmp.le.s32.totalorder 1, %s23
      %p210 = scmp.lt.s32.totalorder %s23, 6
      %p211 = pnand %p209, %p210
      %p212 = pneg %p211
      // Predicated region
      $region9: #{tpu_custom_call.1} parent=5 // pred_check
        _
      $region10: #{tpu_custom_call.1} parent=5 // pred_check_branch
        %214 = sbr.rel (%p211) target = $region12
      $region11: #{tpu_custom_call.1} parent=5 // pred_region
        %s215 = ssub.s32 %s23, 1
        // Predicated region
        $region13: #{tpu_custom_call.1} parent=11 // pred_check
          %p216 = pneg %p70
        $region14: #{tpu_custom_call.1} parent=11 // pred_check_branch
          %218 = sbr.rel (%p216) target = $region16
        $region15: #{tpu_custom_call.1} parent=11 // pred_region
          %s220 = ssub.s32 32, 32
          %221 = vsyncadd [#allocation6], %s220
          %s223 = sshll.u32 %s1, 4
          %s224 = int_to_ptr.vmem [resolvable:$true] %s223
          %226 = dma.vmem_to_smem %s224, 32, [#allocation7], [#allocation6]
        $region16: #{tpu_custom_call.1} parent=11 // pred_fallthru
          _
        // Predicated region
        $region17: #{tpu_custom_call.1} parent=11 // pred_check
          %p227 = pneg %p91
        $region18: #{tpu_custom_call.1} parent=11 // pred_check_branch
          %229 = sbr.rel (%p227) target = $region20
        $region19: #{tpu_custom_call.1} parent=11 // pred_region
          %s231 = ssub.s32 16, 16
          %232 = vsyncadd [#allocation9], %s231
          %s234 = sshll.u32 %s2, 4
          %s235 = int_to_ptr.vmem [resolvable:$true] %s234
          %237 = dma.vmem_to_smem %s235, 16, [#allocation8], [#allocation9]
        $region20: #{tpu_custom_call.1} parent=11 // pred_fallthru
          _
        // Predicated region
        $region21: #{tpu_custom_call.1} parent=11 // pred_check
          %p238 = pneg %p112
        $region22: #{tpu_custom_call.1} parent=11 // pred_check_branch
          %240 = sbr.rel (%p238) target = $region24
        $region23: #{tpu_custom_call.1} parent=11 // pred_region
          %s242 = ssub.s32 64, 64
          %243 = vsyncadd [#allocation9], %s242
          %s245 = sshll.u32 %s3, 4
          %s246 = int_to_ptr.vmem [resolvable:$true] %s245
          %248 = dma.vmem_to_smem %s246, 64, [#allocation10], [#allocation9]
        $region24: #{tpu_custom_call.1} parent=11 // pred_fallthru
          _
        // Predicated region
        $region25: #{tpu_custom_call.1} parent=11 // pred_check
          %p249 = pneg %p133
        $region26: #{tpu_custom_call.1} parent=11 // pred_check_branch
          %251 = sbr.rel (%p249) target = $region28
        $region27: #{tpu_custom_call.1} parent=11 // pred_region
          %s253 = ssub.s32 16, 16
          %254 = vsyncadd [#allocation12], %s253
          %s256 = sshll.u32 %s4, 4
          %s257 = int_to_ptr.vmem [resolvable:$true] %s256
          %259 = dma.vmem_to_smem %s257, 16, [#allocation11], [#allocation12]
        $region28: #{tpu_custom_call.1} parent=11 // pred_fallthru
          _
        // Predicated region
        $region29: #{tpu_custom_call.1} parent=11 // pred_check
          %p260 = pneg %p154
        $region30: #{tpu_custom_call.1} parent=11 // pred_check_branch
          %262 = sbr.rel (%p260) target = $region32
        $region31: #{tpu_custom_call.1} parent=11 // pred_region
          %s264 = ssub.s32 64, 64
          %265 = vsyncadd [#allocation12], %s264
          %s267 = sshll.u32 %s5, 4
          %s268 = int_to_ptr.vmem [resolvable:$true] %s267
          %270 = dma.vmem_to_smem %s268, 64, [#allocation13], [#allocation12]
        $region32: #{tpu_custom_call.1} parent=11 // pred_fallthru
          _
        // Predicated region
        $region33: #{tpu_custom_call.1} parent=11 // pred_check
          %p271 = pneg %p175
        $region34: #{tpu_custom_call.1} parent=11 // pred_check_branch
          %273 = sbr.rel (%p271) target = $region36
        $region35: #{tpu_custom_call.1} parent=11 // pred_region
          _
        $region36: #{tpu_custom_call.1} parent=11 // pred_fallthru
          _
      $region12: #{tpu_custom_call.1} parent=5 // pred_fallthru
        _
      %p274 = scmp.lt.s32.totalorder %s23, 5
      // Predicated region
      $region37: #{tpu_custom_call.1} parent=5 // pred_check
        %p275 = pneg %p274
      $region38: #{tpu_custom_call.1} parent=5 // pred_check_branch
        %277 = sbr.rel (%p275) target = $region40
      $region39: #{tpu_custom_call.1} parent=5 // pred_region
        // Predicated region
        $region41: #{tpu_custom_call.1} parent=39 // pred_check
          %p278 = pneg %p43
        $region42: #{tpu_custom_call.1} parent=39 // pred_check_branch
          %280 = sbr.rel (%p278) target = $region44
        $region43: #{tpu_custom_call.1} parent=39 // pred_region
          %s281 = sand.u32 %s33, 1
          %s282 = scalar_lea.sflag [#allocation4], %s281
          %s283 = sand.u32 %s33, 1
          %s284 = smul.addr %s283, 16
          %s285 = scalar_lea.vmem [#allocation3], %s284
          %s286 = smul.u32 8, %s23
          %s288 = ssub.s32 256, 256
          %289 = vsyncadd %s282, %s288
          %s290 = smul.addr %s286, 32
          %s291 = scalar_lea.hbm %s0, %s290
          %s293 = sshll.u32 %s285, 4
          %s294 = int_to_ptr.vmem [resolvable:$true] %s293
          %296 = dma.hbm_to_vmem [thread:$0]  %s291, 256, %s294, %s282
        $region44: #{tpu_custom_call.1} parent=39 // pred_fallthru
          _
      $region40: #{tpu_custom_call.1} parent=5 // pred_fallthru
        _
      %p297 = scmp.le.s32.totalorder 1, %s23
      %p298 = scmp.lt.s32.totalorder %s23, 6
      %p299 = pnand %p297, %p298
      %p300 = pneg %p299
      // Predicated region
      $region45: #{tpu_custom_call.1} parent=5 // pred_check
        _
      $region46: #{tpu_custom_call.1} parent=5 // pred_check_branch
        %302 = sbr.rel (%p299) target = $region48
      $region47: #{tpu_custom_call.1} parent=5 // pred_region
        %s303 = ssub.s32 %s23, 1
        %s304 = sand.u32 %s36, 1
        %s305 = scalar_lea.sflag [#allocation4], %s304
        %s306 = sand.u32 %s36, 1
        %s307 = smul.addr %s306, 16
        %s308 = scalar_lea.vmem [#allocation3], %s307
        // Predicated region
        $region49: #{tpu_custom_call.1} parent=47 // pred_check
          %p309 = pneg %p49
        $region50: #{tpu_custom_call.1} parent=47 // pred_check_branch
          %311 = sbr.rel (%p309) target = $region52
        $region51: #{tpu_custom_call.1} parent=47 // pred_region
          %312 = dma.done %s305, 256
        $region52: #{tpu_custom_call.1} parent=47 // pred_fallthru
          _
        // Predicated region
        $region53: #{tpu_custom_call.1} parent=47 // pred_check
          %p313 = pneg %p70
        $region54: #{tpu_custom_call.1} parent=47 // pred_check_branch
          %315 = sbr.rel (%p313) target = $region56
        $region55: #{tpu_custom_call.1} parent=47 // pred_region
          %316 = dma.done [#allocation6], 32
        $region56: #{tpu_custom_call.1} parent=47 // pred_fallthru
          _
        // Predicated region
        $region57: #{tpu_custom_call.1} parent=47 // pred_check
          %p317 = pneg %p91
        $region58: #{tpu_custom_call.1} parent=47 // pred_check_branch
          %319 = sbr.rel (%p317) target = $region60
        $region59: #{tpu_custom_call.1} parent=47 // pred_region
          %320 = dma.done [#allocation9], 16
        $region60: #{tpu_custom_call.1} parent=47 // pred_fallthru
          _
        // Predicated region
        $region61: #{tpu_custom_call.1} parent=47 // pred_check
          %p321 = pneg %p112
        $region62: #{tpu_custom_call.1} parent=47 // pred_check_branch
          %323 = sbr.rel (%p321) target = $region64
        $region63: #{tpu_custom_call.1} parent=47 // pred_region
          %324 = dma.done [#allocation9], 64
        $region64: #{tpu_custom_call.1} parent=47 // pred_fallthru
          _
        // Predicated region
        $region65: #{tpu_custom_call.1} parent=47 // pred_check
          %p325 = pneg %p133
        $region66: #{tpu_custom_call.1} parent=47 // pred_check_branch
          %327 = sbr.rel (%p325) target = $region68
        $region67: #{tpu_custom_call.1} parent=47 // pred_region
          %328 = dma.done [#allocation12], 16
        $region68: #{tpu_custom_call.1} parent=47 // pred_fallthru
          _
        // Predicated region
        $region69: #{tpu_custom_call.1} parent=47 // pred_check
          %p329 = pneg %p154
        $region70: #{tpu_custom_call.1} parent=47 // pred_check_branch
          %331 = sbr.rel (%p329) target = $region72
        $region71: #{tpu_custom_call.1} parent=47 // pred_region
          %332 = dma.done [#allocation12], 64
        $region72: #{tpu_custom_call.1} parent=47 // pred_fallthru
          _
        %333 = sfence
        %s334 = sand.u32 %s36, 1
        %s335 = scalar_lea.sflag [#allocation4], %s334
        %s336 = sand.u32 %s36, 1
        %s337 = smul.addr %s336, 16
        %s338 = scalar_lea.vmem [#allocation3], %s337
        %p339 = pneg %p49
        %p340 = pneg %p46
        %p341 = pneg %p70
        %p342 = pneg %p67
        %p343 = pneg %p91
        %p344 = pneg %p88
        %p345 = pneg %p112
        %p346 = pneg %p109
        %p347 = pneg %p133
        %p348 = pneg %p130
        %p349 = pneg %p154
        %p350 = pneg %p151
        %p351 = pneg %p175
        %p352 = pneg %p172
        %p353 = pneg %p201
        %p354 = pneg %p198
        %s355 = sand.u32 %s188, 1
        %s356 = scalar_lea.sflag [#allocation5], %s355
        %s357 = sand.u32 %s188, 1
        %s358 = smul.addr %s357, 8
        %s359 = scalar_lea.vmem [#allocation14], %s358
        %s360 = smul.u32 8, %s28
        %s361 = smul.u32 8, %s28
        %v362 = vld [vmem:[%s308] sm:$0xff]
        %v363 = vld [vmem:[%s308 + $0x8] sm:$0xff]
        %s364 = sld [smem:[#allocation7]]
        %v365 = vstv %s364
        %v366 = vmul.f32 %v365, %v362
        %v367 = vmul.f32 %v365, %v363
        %s368 = sld [smem:[#allocation7 + $0x80]]
        %v369 = vstv %s368
        %v370 = vmul.f32 %v369, %v362
        %v371 = vmul.f32 %v369, %v363
        %v374 = vrot.slane %v370, 7
        %v375 = vrot.slane %v374, 2
        %v376 = vrot.slane %v371, 7
        %v377 = vrot.slane %v376, 2
        %v380 = vadd.f32 %v366, %v375
        %v381 = vadd.f32 %v367, %v377
        %s382 = sld [smem:[#allocation8]]
        %v383 = vstv %s382
        %v384 = vadd.f32 %v380, %v383
        %v385 = vadd.f32 %v381, %v383
        %v386 = vmax.f32 %v384, 0.0
        %v387 = vmax.f32 %v385, 0.0
        %s388 = sld [smem:[#allocation7 + $0x1]]
        %v389 = vstv %s388
        %v390 = vmul.f32 %v389, %v362
        %v391 = vmul.f32 %v389, %v363
        %s392 = sld [smem:[#allocation7 + $0x81]]
        %v393 = vstv %s392
        %v394 = vmul.f32 %v393, %v362
        %v395 = vmul.f32 %v393, %v363
        %v398 = vrot.slane %v394, 7
        %v399 = vrot.slane %v398, 2
        %v400 = vrot.slane %v395, 7
        %v401 = vrot.slane %v400, 2
        %v404 = vadd.f32 %v390, %v399
        %v405 = vadd.f32 %v391, %v401
        %s406 = sld [smem:[#allocation8 + $0x1]]
        %v407 = vstv %s406
        %v408 = vadd.f32 %v404, %v407
        %v409 = vadd.f32 %v405, %v407
        %v410 = vmax.f32 %v408, 0.0
        %v411 = vmax.f32 %v409, 0.0
        %s412 = sld [smem:[#allocation7 + $0x2]]
        %v413 = vstv %s412
        %v414 = vmul.f32 %v413, %v362
        %v415 = vmul.f32 %v413, %v363
        %s416 = sld [smem:[#allocation7 + $0x82]]
        %v417 = vstv %s416
        %v418 = vmul.f32 %v417, %v362
        %v419 = vmul.f32 %v417, %v363
        %v422 = vrot.slane %v418, 7
        %v423 = vrot.slane %v422, 2
        %v424 = vrot.slane %v419, 7
        %v425 = vrot.slane %v424, 2
        %v428 = vadd.f32 %v414, %v423
        %v429 = vadd.f32 %v415, %v425
        %s430 = sld [smem:[#allocation8 + $0x2]]
        %v431 = vstv %s430
        %v432 = vadd.f32 %v428, %v431
        %v433 = vadd.f32 %v429, %v431
        %v434 = vmax.f32 %v432, 0.0
        %v435 = vmax.f32 %v433, 0.0
        %s436 = sld [smem:[#allocation7 + $0x3]]
        %v437 = vstv %s436
        %v438 = vmul.f32 %v437, %v362
        %v439 = vmul.f32 %v437, %v363
        %s440 = sld [smem:[#allocation7 + $0x83]]
        %v441 = vstv %s440
        %v442 = vmul.f32 %v441, %v362
        %v443 = vmul.f32 %v441, %v363
        %v446 = vrot.slane %v442, 7
        %v447 = vrot.slane %v446, 2
        %v448 = vrot.slane %v443, 7
        %v449 = vrot.slane %v448, 2
        %v452 = vadd.f32 %v438, %v447
        %v453 = vadd.f32 %v439, %v449
        %s454 = sld [smem:[#allocation8 + $0x3]]
        %v455 = vstv %s454
        %v456 = vadd.f32 %v452, %v455
        %v457 = vadd.f32 %v453, %v455
        %v458 = vmax.f32 %v456, 0.0
        %v459 = vmax.f32 %v457, 0.0
        %s460 = sld [smem:[#allocation10]]
        %v461 = vstv %s460
        %v462 = vmul.f32 %v461, %v386
        %v463 = vmul.f32 %v461, %v387
        %s464 = sld [smem:[#allocation10 + $0x80]]
        %v465 = vstv %s464
        %v466 = vmul.f32 %v465, %v410
        %v467 = vmul.f32 %v465, %v411
        %v468 = vadd.f32 %v462, %v466
        %v469 = vadd.f32 %v463, %v467
        %s470 = sld [smem:[#allocation10 + $0x100]]
        %v471 = vstv %s470
        %v472 = vmul.f32 %v471, %v434
        %v473 = vmul.f32 %v471, %v435
        %v474 = vadd.f32 %v468, %v472
        %v475 = vadd.f32 %v469, %v473
        %s476 = sld [smem:[#allocation10 + $0x180]]
        %v477 = vstv %s476
        %v478 = vmul.f32 %v477, %v458
        %v479 = vmul.f32 %v477, %v459
        %v480 = vadd.f32 %v474, %v478
        %v481 = vadd.f32 %v475, %v479
        %s482 = sld [smem:[#allocation11]]
        %v483 = vstv %s482
        %v484 = vadd.f32 %v480, %v483
        %v485 = vadd.f32 %v481, %v483
        %v486 = vmax.f32 %v484, 0.0
        %v487 = vmax.f32 %v485, 0.0
        %s488 = sld [smem:[#allocation10 + $0x1]]
        %v489 = vstv %s488
        %v490 = vmul.f32 %v489, %v386
        %v491 = vmul.f32 %v489, %v387
        %s492 = sld [smem:[#allocation10 + $0x81]]
        %v493 = vstv %s492
        %v494 = vmul.f32 %v493, %v410
        %v495 = vmul.f32 %v493, %v411
        %v496 = vadd.f32 %v490, %v494
        %v497 = vadd.f32 %v491, %v495
        %s498 = sld [smem:[#allocation10 + $0x101]]
        %v499 = vstv %s498
        %v500 = vmul.f32 %v499, %v434
        %v501 = vmul.f32 %v499, %v435
        %v502 = vadd.f32 %v496, %v500
        %v503 = vadd.f32 %v497, %v501
        %s504 = sld [smem:[#allocation10 + $0x181]]
        %v505 = vstv %s504
        %v506 = vmul.f32 %v505, %v458
        %v507 = vmul.f32 %v505, %v459
        %v508 = vadd.f32 %v502, %v506
        %v509 = vadd.f32 %v503, %v507
        %s510 = sld [smem:[#allocation11 + $0x1]]
        %v511 = vstv %s510
        %v512 = vadd.f32 %v508, %v511
        %v513 = vadd.f32 %v509, %v511
        %v514 = vmax.f32 %v512, 0.0
        %v515 = vmax.f32 %v513, 0.0
        %s516 = sld [smem:[#allocation10 + $0x2]]
        %v517 = vstv %s516
        %v518 = vmul.f32 %v517, %v386
        %v519 = vmul.f32 %v517, %v387
        %s520 = sld [smem:[#allocation10 + $0x82]]
        %v521 = vstv %s520
        %v522 = vmul.f32 %v521, %v410
        %v523 = vmul.f32 %v521, %v411
        %v524 = vadd.f32 %v518, %v522
        %v525 = vadd.f32 %v519, %v523
        %s526 = sld [smem:[#allocation10 + $0x102]]
        %v527 = vstv %s526
        %v528 = vmul.f32 %v527, %v434
        %v529 = vmul.f32 %v527, %v435
        %v530 = vadd.f32 %v524, %v528
        %v531 = vadd.f32 %v525, %v529
        %s532 = sld [smem:[#allocation10 + $0x182]]
        %v533 = vstv %s532
        %v534 = vmul.f32 %v533, %v458
        %v535 = vmul.f32 %v533, %v459
        %v536 = vadd.f32 %v530, %v534
        %v537 = vadd.f32 %v531, %v535
        %s538 = sld [smem:[#allocation11 + $0x2]]
        %v539 = vstv %s538
        %v540 = vadd.f32 %v536, %v539
        %v541 = vadd.f32 %v537, %v539
        %v542 = vmax.f32 %v540, 0.0
        %v543 = vmax.f32 %v541, 0.0
        %s544 = sld [smem:[#allocation10 + $0x3]]
        %v545 = vstv %s544
        %v546 = vmul.f32 %v545, %v386
        %v547 = vmul.f32 %v545, %v387
        %s548 = sld [smem:[#allocation10 + $0x83]]
        %v549 = vstv %s548
        %v550 = vmul.f32 %v549, %v410
        %v551 = vmul.f32 %v549, %v411
        %v552 = vadd.f32 %v546, %v550
        %v553 = vadd.f32 %v547, %v551
        %s554 = sld [smem:[#allocation10 + $0x103]]
        %v555 = vstv %s554
        %v556 = vmul.f32 %v555, %v434
        %v557 = vmul.f32 %v555, %v435
        %v558 = vadd.f32 %v552, %v556
        %v559 = vadd.f32 %v553, %v557
        %s560 = sld [smem:[#allocation10 + $0x183]]
        %v561 = vstv %s560
        %v562 = vmul.f32 %v561, %v458
        %v563 = vmul.f32 %v561, %v459
        %v564 = vadd.f32 %v558, %v562
        %v565 = vadd.f32 %v559, %v563
        %s566 = sld [smem:[#allocation11 + $0x3]]
        %v567 = vstv %s566
        %v568 = vadd.f32 %v564, %v567
        %v569 = vadd.f32 %v565, %v567
        %v570 = vmax.f32 %v568, 0.0
        %v571 = vmax.f32 %v569, 0.0
        %s572 = sld [smem:[#allocation13]]
        %v573 = vstv %s572
        %v574 = vmul.f32 %v573, %v486
        %v575 = vmul.f32 %v573, %v487
        %s576 = sld [smem:[#allocation13 + $0x80]]
        %v577 = vstv %s576
        %v578 = vmul.f32 %v577, %v514
        %v579 = vmul.f32 %v577, %v515
        %v580 = vadd.f32 %v574, %v578
        %v581 = vadd.f32 %v575, %v579
        %s582 = sld [smem:[#allocation13 + $0x100]]
        %v583 = vstv %s582
        %v584 = vmul.f32 %v583, %v542
        %v585 = vmul.f32 %v583, %v543
        %v586 = vadd.f32 %v580, %v584
        %v587 = vadd.f32 %v581, %v585
        %s588 = sld [smem:[#allocation13 + $0x180]]
        %v589 = vstv %s588
        %v590 = vmul.f32 %v589, %v570
        %v591 = vmul.f32 %v589, %v571
        %v592 = vadd.f32 %v586, %v590
        %v593 = vadd.f32 %v587, %v591
        %s594 = sld [smem:[#allocation2]]
        %v595 = vstv %s594
        %v596 = vadd.f32 %v592, %v595
        %v597 = vadd.f32 %v593, %v595
        %v598 = vxor.u32 %v596, 2147483648
        %v599 = vxor.u32 %v597, 2147483648
        %v600 = vmul.f32 %v598, 1.442695
        %v601 = vpow.pop %v600
        %v602 = vmul.f32 %v599, 1.442695
        %v603 = vpow.pop %v602
        %v604 = vadd.f32 %v601, 1.0
        %v605 = vadd.f32 %v603, 1.0
        %v606 = vrcp.pop %v604
        %v607 = vmul.f32 1.0, %v606
        %v608 = vrcp.pop %v605
        %v609 = vmul.f32 1.0, %v608
        %v613 = vunpack.c.l.s4 1966171168
        %v614 = vunpack.c.0.s8 %v613
        %v615 = vlaneseq
        %v616 = vshrl.u32 %v615, 7
        %v617 = vsub.s32 %v614, %v616
        %v618 = vrot.slane %v607, %v617
        %v620 = vunpack.c.l.s4 1966171168
        %v621 = vunpack.c.0.s8 %v620
        %v622 = vlaneseq
        %v623 = vshrl.u32 %v622, 7
        %v624 = vsub.s32 %v621, %v623
        %v625 = vrot.slane %v609, %v624
        %v626 = vcombine.low %v618, %v625
        %628 = vst [vmem:[%s359] sm:$0xff] %v626
        %s629 = sand.u32 %s188, 1
        %s630 = scalar_lea.sflag [#allocation5], %s629
        %s631 = sand.u32 %s188, 1
        %s632 = smul.addr %s631, 8
        %s633 = scalar_lea.vmem [#allocation14], %s632
        // Predicated region
        $region73: #{tpu_custom_call.1} parent=47 // pred_check
          %p634 = pneg %p198
        $region74: #{tpu_custom_call.1} parent=47 // pred_check_branch
          %636 = sbr.rel (%p634) target = $region76
        $region75: #{tpu_custom_call.1} parent=47 // pred_region
          %s637 = smul.u32 8, %s28
          %s639 = ssub.s32 128, 128
          %640 = vsyncadd %s630, %s639
          %s641 = smul.addr %s637, 16
          %s642 = scalar_lea.hbm %s7, %s641
          %s644 = sshll.u32 %s633, 4
          %s645 = int_to_ptr.vmem [resolvable:$true] %s644
          %647 = dma.vmem_to_hbm [thread:$0]  %s645, 128, %s642, %s630
        $region76: #{tpu_custom_call.1} parent=47 // pred_fallthru
          _
      $region48: #{tpu_custom_call.1} parent=5 // pred_fallthru
        _
      %p648 = scmp.le.s32.totalorder 2, %s23
      // Predicated region
      $region77: #{tpu_custom_call.1} parent=5 // pred_check
        %p649 = pneg %p648
      $region78: #{tpu_custom_call.1} parent=5 // pred_check_branch
        %651 = sbr.rel (%p649) target = $region80
      $region79: #{tpu_custom_call.1} parent=5 // pred_region
        %s652 = ssub.s32 %s23, 2
        // Predicated region
        $region81: #{tpu_custom_call.1} parent=79 // pred_check
          %p653 = pneg %p204
        $region82: #{tpu_custom_call.1} parent=79 // pred_check_branch
          %655 = sbr.rel (%p653) target = $region84
        $region83: #{tpu_custom_call.1} parent=79 // pred_region
          %s656 = sand.u32 %s189, 1
          %s657 = scalar_lea.sflag [#allocation5], %s656
          %s658 = sand.u32 %s189, 1
          %s659 = smul.addr %s658, 8
          %s660 = scalar_lea.vmem [#allocation14], %s659
          %661 = dma.done %s657, 128
        $region84: #{tpu_custom_call.1} parent=79 // pred_fallthru
          _
      $region80: #{tpu_custom_call.1} parent=5 // pred_fallthru
        _
    $region6: #{tpu_custom_call.1} parent=1 // loop_footer
      %s27 = sadd.s32 1, %s23
    $region7: #{tpu_custom_call.1} parent=1 // loop_footer_branch
      %22 = sbr.rel target = $region3
    $region8: #{tpu_custom_call.1} parent=1 // loop_exit
      _
    %662 = vsyncpa [#allocation4], 1
    %s663 = scalar_lea.sflag [#allocation4], 1
    %664 = vsyncpa %s663, 1
    %665 = vsyncpa [#allocation5], 1
    %s666 = scalar_lea.sflag [#allocation5], 1
    %667 = vsyncpa %s666, 1
    %668 = vsyncpa [#allocation6], 1
    %s669 = scalar_lea.sflag [#allocation6], 1
    %670 = vsyncpa %s669, 1
    %671 = vsyncpa [#allocation9], 1
    %672 = vsyncpa [#allocation12], 1

</llo_original>
